<compile_context>
chip_gen: v6e
topology: v6e:2x2x1
jax: 0.10.0
libtpu: 0.0.40
codegen_flags: <defaults>
</compile_context>

<pallas_src>
import jax
import jax.numpy as jnp
from jax.experimental import pallas as pl
from jax.experimental.pallas import tpu as pltpu

F32 = jnp.float32
_INV_SQRT2 = 0.7071067811865476


# ---------------------------------------------------------------------------
# in-kernel math
# ---------------------------------------------------------------------------
def _gelu_exact(x):
    # Exact (erf-based) GELU — torch nn.GELU() default — via the Abramowitz &
    # Stegun 7.1.26 polynomial (|erf err| < 1.5e-7), with the sign folded:
    #   gelu(x) = 0.5*x*(1 + erf(x/sqrt2))
    #           = 0.5*x + (sqrt2/2) * u * (1 - poly(t) * exp(-u*u)),
    #   u = |x|/sqrt2,  t = 1/(1 + p*u)
    # Only VPU/EUP ops with guaranteed Mosaic lowerings (abs/mul/add/div/exp);
    # no select, no sign multiply.
    a1, a2, a3, a4, a5 = (0.254829592, -0.284496736, 1.421413741,
                          -1.453152027, 1.061405429)
    p = 0.3275911
    u = jnp.abs(x) * _INV_SQRT2
    t = 1.0 / (1.0 + p * u)          # exact divide; see header note on approx
    poly = ((((a5 * t + a4) * t + a3) * t + a2) * t + a1) * t
    return 0.5 * x + _INV_SQRT2 * u * (1.0 - poly * jnp.exp(-u * u))


# ---------------------------------------------------------------------------
# fused ClassifierHead kernel: out = GELU(x) @ W^T + b
# ---------------------------------------------------------------------------
def _head_kernel(x_ref, w_ref, b_ref, o_ref):
    x = _gelu_exact(x_ref[...])                                       # VPU/EUP
    y = jnp.dot(x, w_ref[...], preferred_element_type=jnp.float32)    # MXU
    o_ref[...] = (y + b_ref[...]).astype(o_ref.dtype)


def _round_up(x, m):
    return ((x + m - 1) // m) * m


def make_classifier_head(weight, bias, *, block_m=4096, small_m=256):
    """One-time setup: precompute transposed/reshaped params; return head(x).

    weight: (num_classes, 100) — torch nn.Linear.weight layout
    bias:   (num_classes,)
    """
    N, K = weight.shape
    wt = jnp.asarray(weight, F32).T          # (K, N): lane axis = num_classes
    b2 = jnp.asarray(bias, F32).reshape(1, N)

    def head(x):
        M, Kx = x.shape
        assert Kx == K, (Kx, K)
        if M <= small_m:
            # Single grid step; block == full array (no (8,128) constraint
            # issue since block dims equal array dims), whole problem in VMEM.
            tm = M
        else:
            # Big-batch path: large M-tiles (HBM-roofline friendly), but keep
            # grid_m >= 2 so the "parallel" axis shards across both v7x TCs.
            tm = min(block_m, _round_up(-(-M // 2), 8))
        grid_m = pl.cdiv(M, tm)
        # Ragged last block (M % tm != 0) is handled by Pallas masking — no
        # wrapper-side jnp.pad / out[:M] (they would double HBM traffic).
        return pl.pallas_call(
            _head_kernel,
            out_shape=jax.ShapeDtypeStruct((M, N), F32),
            grid=(grid_m,),
            in_specs=[
                pl.BlockSpec((tm, K), lambda i: (i, 0)),
                pl.BlockSpec((K, N), lambda i: (0, 0)),   # weight VMEM-resident
                pl.BlockSpec((1, N), lambda i: (0, 0)),   # bias VMEM-resident
            ],
            out_specs=pl.BlockSpec((tm, N), lambda i: (i, 0)),
            compiler_params=pltpu.CompilerParams(
                dimension_semantics=("parallel",)),
        )(x.astype(F32), wt, b2)

    return head


def classifier_head(x, weight, bias, **kw):
    """Convenience one-shot wrapper (re-does the param plumbing each call)."""
    return make_classifier_head(weight, bias, **kw)(x)


# ---------------------------------------------------------------------------
if __name__ == "__main__":
    NUM_CLASSES = 45
    key = jax.random.PRNGKey(0)
    kx, kw, kb, kx2 = jax.random.split(key, 4)

    # ClassifierHead.forward implies x: (batch, 100)
    x = jax.random.normal(kx, (2, 100), dtype=F32)
    w = 0.05 * jax.random.normal(kw, (NUM_CLASSES, 100), dtype=F32)  # Linear.weight
    b = 0.01 * jax.random.normal(kb, (NUM_CLASSES,), dtype=F32)      # Linear.bias

    head = jax.jit(make_classifier_head(w, b))

    # small-batch (single grid step) path
    out = jax.block_until_ready(head(x))
    assert out.shape == (2, NUM_CLASSES), out.shape
    assert bool(jnp.all(jnp.isfinite(out)))
    ref = jax.nn.gelu(x, approximate=False) @ w.T + b                # exact-GELU ref
    assert bool(jnp.allclose(out, ref, atol=1e-4, rtol=1e-4)), \
        float(jnp.max(jnp.abs(out - ref)))

    # tiled + ragged path (grid_m = 2, last block partially out of bounds,
    # no wrapper-side padding or output slicing)
    xb = jax.random.normal(kx2, (600, 100), dtype=F32)
    out_big = jax.block_until_ready(head(xb))
    ref_big = jax.nn.gelu(xb, approximate=False) @ w.T + b
    assert out_big.shape == (600, NUM_CLASSES), out_big.shape
    assert bool(jnp.allclose(out_big, ref_big, atol=1e-4, rtol=1e-4)), \
        float(jnp.max(jnp.abs(out_big - ref_big)))

    print("KERNEL_OK")
</pallas_src>

<mosaic_0001>
module attributes {stable_mosaic.version = 11 : i64} {
  func.func @_head_kernel(%arg0: i32, %arg1: memref<2x100xf32, #tpu.memory_space<vmem>>, %arg2: memref<100x45xf32, #tpu.memory_space<vmem>>, %arg3: memref<1x45xf32, #tpu.memory_space<vmem>>, %arg4: memref<2x45xf32, #tpu.memory_space<vmem>>) attributes {dimension_semantics = [#tpu.dimension_semantics<parallel>], iteration_bounds = array<i64: 1>, scalar_prefetch = 0 : i64, scratch_operands = 0 : i64, tpu.core_type = #tpu.core_type<tc>, window_params = [{transform_indices = @transform_0, window_bounds = array<i64: 2, 100>}, {pipeline_mode = #tpu.pipeline_mode<synchronous>, transform_indices = @transform_1, window_bounds = array<i64: 100, 45>}, {pipeline_mode = #tpu.pipeline_mode<synchronous>, transform_indices = @transform_2, window_bounds = array<i64: 1, 45>}, {transform_indices = @transform_3, window_bounds = array<i64: 2, 45>}]} {
    %c0 = arith.constant 0 : index
    %c0_0 = arith.constant 0 : index
    %0 = vector.load %arg1[%c0, %c0_0] : memref<2x100xf32, #tpu.memory_space<vmem>>, vector<2x100xf32>
    %1 = math.absf %0 : vector<2x100xf32>
    %cst = arith.constant 0.707106769 : f32
    %2 = vector.broadcast %cst : f32 to vector<2x100xf32>
    %3 = arith.mulf %1, %2 : vector<2x100xf32>
    %cst_1 = arith.constant 0.327591091 : f32
    %4 = vector.broadcast %cst_1 : f32 to vector<2x100xf32>
    %5 = arith.mulf %4, %3 : vector<2x100xf32>
    %cst_2 = arith.constant 1.000000e+00 : f32
    %6 = vector.broadcast %cst_2 : f32 to vector<2x100xf32>
    %7 = arith.addf %6, %5 : vector<2x100xf32>
    %cst_3 = arith.constant 1.000000e+00 : f32
    %8 = vector.broadcast %cst_3 : f32 to vector<2x100xf32>
    %9 = arith.divf %8, %7 : vector<2x100xf32>
    %cst_4 = arith.constant 1.06140542 : f32
    %10 = vector.broadcast %cst_4 : f32 to vector<2x100xf32>
    %11 = arith.mulf %10, %9 : vector<2x100xf32>
    %cst_5 = arith.constant -1.45315206 : f32
    %12 = vector.broadcast %cst_5 : f32 to vector<2x100xf32>
    %13 = arith.addf %11, %12 : vector<2x100xf32>
    %14 = arith.mulf %13, %9 : vector<2x100xf32>
    %cst_6 = arith.constant 1.42141378 : f32
    %15 = vector.broadcast %cst_6 : f32 to vector<2x100xf32>
    %16 = arith.addf %14, %15 : vector<2x100xf32>
    %17 = arith.mulf %16, %9 : vector<2x100xf32>
    %cst_7 = arith.constant -0.284496725 : f32
    %18 = vector.broadcast %cst_7 : f32 to vector<2x100xf32>
    %19 = arith.addf %17, %18 : vector<2x100xf32>
    %20 = arith.mulf %19, %9 : vector<2x100xf32>
    %cst_8 = arith.constant 0.254829586 : f32
    %21 = vector.broadcast %cst_8 : f32 to vector<2x100xf32>
    %22 = arith.addf %20, %21 : vector<2x100xf32>
    %23 = arith.mulf %22, %9 : vector<2x100xf32>
    %cst_9 = arith.constant 5.000000e-01 : f32
    %24 = vector.broadcast %cst_9 : f32 to vector<2x100xf32>
    %25 = arith.mulf %24, %0 : vector<2x100xf32>
    %cst_10 = arith.constant 0.707106769 : f32
    %26 = vector.broadcast %cst_10 : f32 to vector<2x100xf32>
    %27 = arith.mulf %26, %3 : vector<2x100xf32>
    %cst_11 = arith.constant 0.000000e+00 : f32
    %28 = vector.broadcast %cst_11 : f32 to vector<2x100xf32>
    %29 = arith.subf %28, %3 : vector<2x100xf32>
    %30 = arith.mulf %29, %3 : vector<2x100xf32>
    %31 = math.exp %30 : vector<2x100xf32>
    %32 = arith.mulf %23, %31 : vector<2x100xf32>
    %cst_12 = arith.constant 1.000000e+00 : f32
    %33 = vector.broadcast %cst_12 : f32 to vector<2x100xf32>
    %34 = arith.subf %33, %32 : vector<2x100xf32>
    %35 = arith.mulf %27, %34 : vector<2x100xf32>
    %36 = arith.addf %25, %35 : vector<2x100xf32>
    %c0_13 = arith.constant 0 : index
    %c0_14 = arith.constant 0 : index
    %37 = vector.load %arg2[%c0_13, %c0_14] : memref<100x45xf32, #tpu.memory_space<vmem>>, vector<100x45xf32>
    %cst_15 = arith.constant dense<0.000000e+00> : vector<2x45xf32>
    %38 = tpu.matmul %36, %37, %cst_15 {dimension_numbers = #tpu.dot_dimension_numbers<[1], [0], [0], [1], [0, 0, 1, 1], [], []>} : vector<2x100xf32>, vector<100x45xf32>, vector<2x45xf32> -> vector<2x45xf32>
    %c0_16 = arith.constant 0 : index
    %c0_17 = arith.constant 0 : index
    %39 = vector.load %arg3[%c0_16, %c0_17] : memref<1x45xf32, #tpu.memory_space<vmem>>, vector<1x45xf32>
    %40 = vector.broadcast %39 : vector<1x45xf32> to vector<2x45xf32>
    %41 = arith.addf %38, %40 : vector<2x45xf32>
    %c0_18 = arith.constant 0 : index
    %c0_19 = arith.constant 0 : index
    %42 = vector.load %arg4[%c0_18, %c0_19] : memref<2x45xf32, #tpu.memory_space<vmem>>, vector<2x45xf32>
    tpu.vector_store %arg4[%c0_18, %c0_19], %41 {strides = array<i32>} : memref<2x45xf32, #tpu.memory_space<vmem>>, vector<2x45xf32>,
    return
  }
  func.func @transform_0(%arg0: i32) -> (i32, i32) {
    %c0_i32 = arith.constant 0 : i32
    %c0_i32_0 = arith.constant 0 : i32
    return %arg0, %c0_i32 : i32, i32
  }
  func.func @transform_1(%arg0: i32) -> (i32, i32) {
    %c0_i32 = arith.constant 0 : i32
    %c0_i32_0 = arith.constant 0 : i32
    %c0_i32_1 = arith.constant 0 : i32
    return %c0_i32, %c0_i32_0 : i32, i32
  }
  func.func @transform_2(%arg0: i32) -> (i32, i32) {
    %c0_i32 = arith.constant 0 : i32
    %c0_i32_0 = arith.constant 0 : i32
    %c0_i32_1 = arith.constant 0 : i32
    return %c0_i32, %c0_i32_0 : i32, i32
  }
  func.func @transform_3(%arg0: i32) -> (i32, i32) {
    %c0_i32 = arith.constant 0 : i32
    %c0_i32_0 = arith.constant 0 : i32
    return %arg0, %c0_i32 : i32, i32
  }
}

</mosaic_0001>

<llo_original>
// kernel: head.1
$region0: #{head.1}
  #allocation0 [shape = 'u32[]', space=smem, size = 0x4, offset = 0x4, fixed_abs, tag = 'smem constant byte address 0x4 - core index']
  #allocation1 [shape = 'u32[144,128]{1,0:T(1,128)}', space=vmem, size = 0x12000, scoped, tag = 'internal scratch']
  %s0 = inlined_call_operand.hbm [shape: f32[2,100], index: 0, kind: input, shape index: {}]
  %s1 = inlined_call_operand.hbm [shape: f32[100,45], index: 1, kind: input, shape index: {}]
  %s2 = inlined_call_operand.vmem [shape: f32[1,45], index: 2, kind: input, shape index: {}]
  %s3 = inlined_call_operand.hbm [shape: f32[2,45], index: 3, kind: output, shape index: {}]
  %s4 = sld [smem:[#allocation0]]
  $region30: #{head.1} parent=0
    _
  %s6 = ssub.s32 1, %s4
  %s7 = scalar_select 0, %s6, %s4
  $region1: #{head.1} parent=0
    #allocation2 [shape = 'u8[1024]{0}', space=vmem, size = 0x400, scoped, tag = 'input window, operand 0, single buffered']
    #allocation3 [shape = 's32[1]{0}', space=sflag, size = 0x4, scoped, tag = 'scoped memory for head.1']
    #allocation4 [shape = 's32[1]{0}', space=sflag, size = 0x4, scoped, tag = 'scoped memory for head.1']
    #allocation5 [shape = 'u8[53248]{0}', space=vmem, size = 0xd000, scoped, tag = 'input window, operand 1, single buffered']
    #allocation6 [shape = 's32[1]{0}', space=sflag, size = 0x4, scoped, tag = 'scoped memory for head.1']
    #allocation7 [shape = 'u8[1024]{0}', space=vmem, size = 0x400, scoped, tag = 'output window, operand 0, single buffered']
    %8 = vsyncpa [#allocation3], 0
    %9 = vsyncpa [#allocation6], 0
    %10 = vsyncpa [#allocation4], 0
    // Predicated region
    $region2: #{head.1} parent=1 // pred_check
      _
    $region3: #{head.1} parent=1 // pred_check_branch
      %12 = sbr.rel (0) target = $region5
    $region4: #{head.1} parent=1 // pred_region
      %s14 = ssub.s32 32, 32
      %15 = vsyncadd [#allocation3], %s14
      %s17 = sshll.u32 [#allocation2], 4
      %s18 = int_to_ptr.vmem [resolvable:$true] %s17
      %20 = dma.hbm_to_vmem [thread:$0]  %s0, 32, %s18, [#allocation3]
    $region5: #{head.1} parent=1 // pred_fallthru
      _
    // Predicated region
    $region6: #{head.1} parent=1 // pred_check
      _
    $region7: #{head.1} parent=1 // pred_check_branch
      %22 = sbr.rel (0) target = $region9
    $region8: #{head.1} parent=1 // pred_region
      %s24 = ssub.s32 1664, 1664
      %25 = vsyncadd [#allocation6], %s24
      %s26 = sshll.u32 [#allocation5], 4
      %s27 = int_to_ptr.vmem [resolvable:$true] %s26
      %32 = dma.hbm_to_vmem [thread:$0]  %s1, 1664, %s27, [#allocation6], 128, 128, 8
    $region9: #{head.1} parent=1 // pred_fallthru
      _
    // Predicated region
    $region10: #{head.1} parent=1 // pred_check
      _
    $region11: #{head.1} parent=1 // pred_check_branch
      %34 = sbr.rel (0) target = $region13
    $region12: #{head.1} parent=1 // pred_region
      _
    $region13: #{head.1} parent=1 // pred_fallthru
      _
    // Predicated region
    $region14: #{head.1} parent=1 // pred_check
      _
    $region15: #{head.1} parent=1 // pred_check_branch
      %36 = sbr.rel (0) target = $region17
    $region16: #{head.1} parent=1 // pred_region
      %37 = dma.done [#allocation3], 32
    $region17: #{head.1} parent=1 // pred_fallthru
      _
    // Predicated region
    $region18: #{head.1} parent=1 // pred_check
      _
    $region19: #{head.1} parent=1 // pred_check_branch
      %39 = sbr.rel (0) target = $region21
    $region20: #{head.1} parent=1 // pred_region
      %40 = dma.done [#allocation6], 1664
    $region21: #{head.1} parent=1 // pred_fallthru
      _
    %v41 = vld [vmem:[#allocation2] sm:$0x3]
    %v42 = vand.u32 2147483647, %v41
    %v43 = vmul.f32 %v42, 0.70710677
    %v44 = vmul.f32 %v43, 0.3275911
    %v45 = vadd.f32 %v44, 1.0
    %v46 = vrcp.pop %v45
    %v47 = vmul.f32 1.0, %v46
    %v48 = vmul.f32 %v47, 1.0614054
    %v49 = vadd.f32 %v48, -1.4531521
    %v50 = vmul.f32 %v49, %v47
    %v51 = vadd.f32 %v50, 1.4214138
    %v52 = vmul.f32 %v51, %v47
    %v53 = vadd.f32 %v52, -0.28449672
    %v54 = vmul.f32 %v53, %v47
    %v55 = vadd.f32 %v54, 0.2548296
    %v56 = vmul.f32 %v55, %v47
    %v57 = vmul.f32 %v41, 0.5
    %v58 = vmul.f32 %v43, 0.70710677
    %v59 = vsub.f32 0.0, %v43
    %v60 = vmul.f32 %v59, %v43
    %v61 = vmul.f32 %v60, 1.442695
    %v62 = vpow.pop %v61
    %v63 = vmul.f32 %v56, %v62
    %v64 = vsub.f32 1.0, %v63
    %v65 = vmul.f32 %v58, %v64
    %v66 = vadd.f32 %v57, %v65
    %v67 = vld [vmem:[#allocation5] sm:$0xff]
    %v68 = vld [vmem:[#allocation5 + $0x8] sm:$0xff]
    %v69 = vld [vmem:[#allocation5 + $0x10] sm:$0xff]
    %v70 = vld [vmem:[#allocation5 + $0x18] sm:$0xff]
    %v71 = vld [vmem:[#allocation5 + $0x20] sm:$0xff]
    %v72 = vld [vmem:[#allocation5 + $0x28] sm:$0xff]
    %v73 = vld [vmem:[#allocation5 + $0x30] sm:$0xff]
    %v74 = vld [vmem:[#allocation5 + $0x38] sm:$0xff]
    %v75 = vld [vmem:[#allocation5 + $0x40] sm:$0xff]
    %v76 = vld [vmem:[#allocation5 + $0x48] sm:$0xff]
    %v77 = vld [vmem:[#allocation5 + $0x50] sm:$0xff]
    %v78 = vld [vmem:[#allocation5 + $0x58] sm:$0xff]
    %v79 = vld [vmem:[#allocation5 + $0x60] sm:$0xf]
    %v80 = vld [vmem:[%s2] sm:$0x1]
    %v82 = vlaneseq
    %v83 = vshrl.u32 %v82, 7
    %v84 = vsub.s32 0, %v83
    %v85 = vrot.slane %v80, %v84
    %vm87 = vcmask 818176
    %v89 = vsel %vm87, %v66, 0
    %vm91 = vcmask 1043456
    %v93 = vsel %vm91, %v79, 0
    %95 = vmatprep.subr.mxu0 0.0
    %96 = vmatpush1.msra.mxu0 0.0
    %97 = vmatprep.subr.mxu0 0.0
    %98 = vmatpush1.msra.mxu0 0.0
    %99 = vmatprep.subr.mxu0 0.0
    %100 = vmatpush1.msra.mxu0 0.0
    %101 = vmatprep.subr.mxu0 0.0
    %102 = vmatpush1.msra.mxu0 %v93
    %103 = vmatprep.subr.mxu0 0.0
    %104 = vmatpush1.msra.mxu0 %v78
    %105 = vmatprep.subr.mxu0 0.0
    %106 = vmatpush1.msra.mxu0 %v77
    %107 = vmatprep.subr.mxu0 0.0
    %108 = vmatpush1.msra.mxu0 %v76
    %109 = vmatprep.subr.mxu0 0.0
    %110 = vmatpush1.msra.mxu0 %v75
    %111 = vmatprep.subr.mxu0 0.0
    %112 = vmatpush1.msra.mxu0 %v74
    %113 = vmatprep.subr.mxu0 0.0
    %114 = vmatpush1.msra.mxu0 %v73
    %115 = vmatprep.subr.mxu0 0.0
    %116 = vmatpush1.msra.mxu0 %v72
    %117 = vmatprep.subr.mxu0 0.0
    %118 = vmatpush1.msra.mxu0 %v71
    %119 = vmatprep.subr.mxu0 0.0
    %120 = vmatpush1.msra.mxu0 %v70
    %121 = vmatprep.subr.mxu0 0.0
    %122 = vmatpush1.msra.mxu0 %v69
    %123 = vmatprep.subr.mxu0 0.0
    %124 = vmatpush1.msra.mxu0 %v68
    %125 = vmatprep.subr.mxu0 0.0
    %126 = vmatpush1.msra.mxu0 %v67
    %127 = vmatprep.subr.mxu0 0.0
    %128 = vmatpush2.msra.mxu0 0.0
    %129 = vmatprep.subr.mxu0 0.0
    %130 = vmatpush2.msra.mxu0 0.0
    %131 = vmatprep.subr.mxu0 0.0
    %132 = vmatpush2.msra.mxu0 0.0
    %133 = vmatprep.subr.mxu0 0.0
    %134 = vmatpush2.msra.mxu0 0.0
    %135 = vmatprep.subr.mxu0 0.0
    %136 = vmatpush2.msra.mxu0 0.0
    %137 = vmatprep.subr.mxu0 0.0
    %138 = vmatpush2.msra.mxu0 0.0
    %139 = vmatprep.subr.mxu0 0.0
    %140 = vmatpush2.msra.mxu0 0.0
    %141 = vmatprep.subr.mxu0 0.0
    %142 = vmatpush2.msra.mxu0 0.0
    %143 = vmatprep.subr.mxu0 0.0
    %144 = vmatpush2.msra.mxu0 0.0
    %145 = vmatprep.subr.mxu0 0.0
    %146 = vmatpush2.msra.mxu0 0.0
    %147 = vmatprep.subr.mxu0 0.0
    %148 = vmatpush2.msra.mxu0 0.0
    %149 = vmatprep.subr.mxu0 0.0
    %150 = vmatpush2.msra.mxu0 0.0
    %151 = vmatprep.subr.mxu0 0.0
    %152 = vmatpush2.msra.mxu0 0.0
    %153 = vmatprep.subr.mxu0 0.0
    %154 = vmatpush2.msra.mxu0 0.0
    %155 = vmatprep.subr.mxu0 0.0
    %156 = vmatpush2.msra.mxu0 0.0
    %157 = vmatprep.subr.mxu0 0.0
    %158 = vmatpush2.msra.mxu0 0.0
    %159 = vmatprep.mubr.f32.mxu0 0.0
    %160 = vmatmul.mubr.f32.gmra.mxu0 %v89
    %v161 = vpop.f32.mrf.mxu0
    %v162 = vadd.f32 %v85, %v161
    %v163 = vpop.f32.mrf.mxu0
    %164 = vdwg.mxu0
    %vm165 = vcmask 361472
    %166 = vst.msk [vmem:[#allocation7] sm:$0x3] %vm165, %v162
    // Predicated region
    $region22: #{head.1} parent=1 // pred_check
      _
    $region23: #{head.1} parent=1 // pred_check_branch
      %168 = sbr.rel (0) target = $region25
    $region24: #{head.1} parent=1 // pred_region
      %s170 = ssub.s32 32, 32
      %171 = vsyncadd [#allocation4], %s170
      %s173 = sshll.u32 [#allocation7], 4
      %s174 = int_to_ptr.vmem [resolvable:$true] %s173
      %176 = dma.vmem_to_hbm [thread:$0]  %s174, 32, %s3, [#allocation4]
    $region25: #{head.1} parent=1 // pred_fallthru
      _
    // Predicated region
    $region26: #{head.1} parent=1 // pred_check
      _
    $region27: #{head.1} parent=1 // pred_check_branch
      %178 = sbr.rel (0) target = $region29
    $region28: #{head.1} parent=1 // pred_region
      %179 = dma.done [#allocation4], 32
    $region29: #{head.1} parent=1 // pred_fallthru
      _
    %180 = vsyncpa [#allocation3], 1
    %181 = vsyncpa [#allocation6], 1
    %182 = vsyncpa [#allocation4], 1

</llo_original>
